<compile_context>
chip_gen: v7x
topology: tpu7x:2x2x1
jax: 0.10.0
libtpu: 0.0.40
codegen_flags: <defaults>
</compile_context>

<pallas_src>
import jax
import jax.numpy as jnp
from jax.experimental import pallas as pl
from jax.experimental.pallas import tpu as pltpu

HIDDEN = 64          # real hidden width of fc1/fc2
K_PAD = 128          # padded contraction/row dim shared by x, w1, w2, heads
HIDDEN_PAD = 128     # padded hidden width (zero-padded cols; ReLU(0)=0)
HEAD_PAD = 128       # each head (mu / log_std) padded to a full lane register
W_COLS = 2 * HIDDEN_PAD + 2 * HEAD_PAD   # 512: [w1 | w2 | wmu | wls]
OUT_COLS = 2 * HEAD_PAD                  # 256: [mu | std]


def actor_net_kernel(x_ref, w_ref, b_ref, out_ref):
    x = x_ref[...]                                           # [TB, 128] f32

    # fc1 + ReLU   (w1 in packed cols [0, 128))
    h1 = jnp.dot(x, w_ref[:, 0:HIDDEN_PAD],
                 preferred_element_type=jnp.float32) + b_ref[:, 0:HIDDEN_PAD]
    h1 = jnp.maximum(h1, 0.0)

    # fc2 + ReLU   (w2 in packed cols [128, 256))
    h2 = jnp.dot(h1, w_ref[:, HIDDEN_PAD:2 * HIDDEN_PAD],
                 preferred_element_type=jnp.float32) \
        + b_ref[:, HIDDEN_PAD:2 * HIDDEN_PAD]
    h2 = jnp.maximum(h2, 0.0)

    # Fused heads: single matmul producing [TB, 256] (mu | log_std)
    heads = jnp.dot(h2, w_ref[:, 2 * HIDDEN_PAD:W_COLS],
                    preferred_element_type=jnp.float32) \
        + b_ref[:, 2 * HIDDEN_PAD:W_COLS]

    # Lane-dense, 128-aligned stores: mu -> [0,128), std -> [128,256)
    out_ref[:, 0:HEAD_PAD] = heads[:, 0:HEAD_PAD]
    out_ref[:, HEAD_PAD:OUT_COLS] = jnp.exp(
        jnp.clip(heads[:, HEAD_PAD:OUT_COLS], -20.0, 2.0))


def pack_params(params, input_dim, out_dim):
    """Pack all weights/biases into one [128,512] and one [1,512] f32 buffer."""
    w = jnp.zeros((K_PAD, W_COLS), jnp.float32)
    b = jnp.zeros((1, W_COLS), jnp.float32)
    c_mu = 2 * HIDDEN_PAD
    c_ls = 2 * HIDDEN_PAD + HEAD_PAD
    w = w.at[:input_dim, 0:HIDDEN].set(params["w1"])
    w = w.at[:HIDDEN, HIDDEN_PAD:HIDDEN_PAD + HIDDEN].set(params["w2"])
    w = w.at[:HIDDEN, c_mu:c_mu + out_dim].set(params["wmu"])
    w = w.at[:HIDDEN, c_ls:c_ls + out_dim].set(params["wls"])
    b = b.at[:, 0:HIDDEN].set(params["b1"])
    b = b.at[:, HIDDEN_PAD:HIDDEN_PAD + HIDDEN].set(params["b2"])
    b = b.at[:, c_mu:c_mu + out_dim].set(params["bmu"])
    b = b.at[:, c_ls:c_ls + out_dim].set(params["bls"])
    return w, b


def actor_net_forward(x, params):
    B, input_dim = x.shape
    out_dim = params["wmu"].shape[1]
    assert input_dim <= K_PAD and HIDDEN <= HIDDEN_PAD and out_dim <= HEAD_PAD

    w_packed, b_packed = pack_params(params, input_dim, out_dim)

    # Batch tile: >= 8 sublanes, up to 256 rows per grid step (fills MXU M).
    b8 = ((B + 7) // 8) * 8
    tb = min(256, b8)
    b_pad = ((B + tb - 1) // tb) * tb
    x_pad = jnp.zeros((b_pad, K_PAD), jnp.float32).at[:B, :input_dim].set(x)

    out = pl.pallas_call(
        actor_net_kernel,
        out_shape=jax.ShapeDtypeStruct((b_pad, OUT_COLS), jnp.float32),
        grid=(b_pad // tb,),
        in_specs=[
            pl.BlockSpec((tb, K_PAD), lambda i: (i, 0)),      # x tile
            pl.BlockSpec((K_PAD, W_COLS), lambda i: (0, 0)),  # packed weights
            pl.BlockSpec((1, W_COLS), lambda i: (0, 0)),      # packed biases
        ],
        out_specs=pl.BlockSpec((tb, OUT_COLS), lambda i: (i, 0)),
        compiler_params=pltpu.CompilerParams(
            dimension_semantics=("parallel",)),
    )(x_pad, w_packed, b_packed)

    mu = out[:B, 0:out_dim]
    std = out[:B, HEAD_PAD:HEAD_PAD + out_dim]
    return mu, std


def init_params(key, input_dim, output_dim, hidden=HIDDEN):
    # Deterministic synthetic init (roughly PyTorch Linear's uniform fan-in init).
    keys = jax.random.split(key, 8)

    def linear(kw, kb, fan_in, fan_out):
        bound = 1.0 / jnp.sqrt(fan_in)
        w = jax.random.uniform(kw, (fan_in, fan_out), jnp.float32, -bound, bound)
        b = jax.random.uniform(kb, (1, fan_out), jnp.float32, -bound, bound)
        return w, b

    w1, b1 = linear(keys[0], keys[1], input_dim, hidden)
    w2, b2 = linear(keys[2], keys[3], hidden, hidden)
    wmu, bmu = linear(keys[4], keys[5], hidden, output_dim)
    wls, bls = linear(keys[6], keys[7], hidden, output_dim)
    return dict(w1=w1, b1=b1, w2=w2, b2=b2,
                wmu=wmu, bmu=bmu, wls=wls, bls=bls)


def reference_forward(x, p):
    h1 = jnp.maximum(x @ p["w1"] + p["b1"], 0.0)
    h2 = jnp.maximum(h1 @ p["w2"] + p["b2"], 0.0)
    mu = h2 @ p["wmu"] + p["bmu"]
    log_std = jnp.clip(h2 @ p["wls"] + p["bls"], -20.0, 2.0)
    return mu, jnp.exp(log_std)


if __name__ == "__main__":
    key = jax.random.PRNGKey(0)
    k_x, k_p = jax.random.split(key)

    batch, input_dim, output_dim = 2, 32, 8
    x = jax.random.normal(k_x, (batch, input_dim), jnp.float32)
    params = init_params(k_p, input_dim, output_dim)

    mu, std = actor_net_forward(x, params)
    jax.block_until_ready((mu, std))

    mu_ref, std_ref = reference_forward(x, params)
    assert mu.shape == (batch, output_dim) and std.shape == (batch, output_dim)
    assert jnp.allclose(mu, mu_ref, atol=1e-5, rtol=1e-5)
    assert jnp.allclose(std, std_ref, atol=1e-5, rtol=1e-5)

    print("KERNEL_OK")
</pallas_src>

<mosaic_0001>
module attributes {stable_mosaic.version = 11 : i64} {
  func.func @actor_net_kernel(%arg0: i32, %arg1: memref<8x128xf32, #tpu.memory_space<vmem>>, %arg2: memref<128x512xf32, #tpu.memory_space<vmem>>, %arg3: memref<1x512xf32, #tpu.memory_space<vmem>>, %arg4: memref<8x256xf32, #tpu.memory_space<vmem>>) attributes {dimension_semantics = [#tpu.dimension_semantics<parallel>], iteration_bounds = array<i64: 1>, scalar_prefetch = 0 : i64, scratch_operands = 0 : i64, tpu.core_type = #tpu.core_type<tc>, window_params = [{transform_indices = @transform_0, window_bounds = array<i64: 8, 128>}, {pipeline_mode = #tpu.pipeline_mode<synchronous>, transform_indices = @transform_1, window_bounds = array<i64: 128, 512>}, {pipeline_mode = #tpu.pipeline_mode<synchronous>, transform_indices = @transform_2, window_bounds = array<i64: 1, 512>}, {transform_indices = @transform_3, window_bounds = array<i64: 8, 256>}]} {
    %c0 = arith.constant 0 : index
    %c0_0 = arith.constant 0 : index
    %0 = vector.load %arg1[%c0, %c0_0] : memref<8x128xf32, #tpu.memory_space<vmem>>, vector<8x128xf32>
    %c0_1 = arith.constant 0 : index
    %c0_2 = arith.constant 0 : index
    %1 = vector.load %arg2[%c0_1, %c0_2] : memref<128x512xf32, #tpu.memory_space<vmem>>, vector<128x128xf32>
    %cst = arith.constant dense<0.000000e+00> : vector<8x128xf32>
    %2 = tpu.matmul %0, %1, %cst {dimension_numbers = #tpu.dot_dimension_numbers<[1], [0], [0], [1], [0, 0, 1, 1], [], []>} : vector<8x128xf32>, vector<128x128xf32>, vector<8x128xf32> -> vector<8x128xf32>
    %c0_3 = arith.constant 0 : index
    %c0_4 = arith.constant 0 : index
    %3 = vector.load %arg3[%c0_3, %c0_4] : memref<1x512xf32, #tpu.memory_space<vmem>>, vector<1x128xf32>
    %4 = vector.broadcast %3 : vector<1x128xf32> to vector<8x128xf32>
    %5 = arith.addf %2, %4 : vector<8x128xf32>
    %cst_5 = arith.constant 0.000000e+00 : f32
    %6 = vector.broadcast %cst_5 : f32 to vector<8x128xf32>
    %7 = arith.maximumf %5, %6 : vector<8x128xf32>
    %c0_6 = arith.constant 0 : index
    %c128 = arith.constant 128 : index
    %8 = vector.load %arg2[%c0_6, %c128] : memref<128x512xf32, #tpu.memory_space<vmem>>, vector<128x128xf32>
    %cst_7 = arith.constant dense<0.000000e+00> : vector<8x128xf32>
    %9 = tpu.matmul %7, %8, %cst_7 {dimension_numbers = #tpu.dot_dimension_numbers<[1], [0], [0], [1], [0, 0, 1, 1], [], []>} : vector<8x128xf32>, vector<128x128xf32>, vector<8x128xf32> -> vector<8x128xf32>
    %c0_8 = arith.constant 0 : index
    %c128_9 = arith.constant 128 : index
    %10 = vector.load %arg3[%c0_8, %c128_9] : memref<1x512xf32, #tpu.memory_space<vmem>>, vector<1x128xf32>
    %11 = vector.broadcast %10 : vector<1x128xf32> to vector<8x128xf32>
    %12 = arith.addf %9, %11 : vector<8x128xf32>
    %cst_10 = arith.constant 0.000000e+00 : f32
    %13 = vector.broadcast %cst_10 : f32 to vector<8x128xf32>
    %14 = arith.maximumf %12, %13 : vector<8x128xf32>
    %c0_11 = arith.constant 0 : index
    %c256 = arith.constant 256 : index
    %15 = vector.load %arg2[%c0_11, %c256] : memref<128x512xf32, #tpu.memory_space<vmem>>, vector<128x256xf32>
    %cst_12 = arith.constant dense<0.000000e+00> : vector<8x256xf32>
    %16 = tpu.matmul %14, %15, %cst_12 {dimension_numbers = #tpu.dot_dimension_numbers<[1], [0], [0], [1], [0, 0, 1, 1], [], []>} : vector<8x128xf32>, vector<128x256xf32>, vector<8x256xf32> -> vector<8x256xf32>
    %c0_13 = arith.constant 0 : index
    %c256_14 = arith.constant 256 : index
    %17 = vector.load %arg3[%c0_13, %c256_14] : memref<1x512xf32, #tpu.memory_space<vmem>>, vector<1x256xf32>
    %18 = vector.broadcast %17 : vector<1x256xf32> to vector<8x256xf32>
    %19 = arith.addf %16, %18 : vector<8x256xf32>
    %20 = vector.extract_strided_slice %19 {offsets = [0, 0], sizes = [8, 128], strides = [1, 1]} : vector<8x256xf32> to vector<8x128xf32>
    %c0_15 = arith.constant 0 : index
    %c0_16 = arith.constant 0 : index
    %21 = vector.load %arg4[%c0_15, %c0_16] : memref<8x256xf32, #tpu.memory_space<vmem>>, vector<8x128xf32>
    tpu.vector_store %arg4[%c0_15, %c0_16], %20 {strides = array<i32>} : memref<8x256xf32, #tpu.memory_space<vmem>>, vector<8x128xf32>,
    %22 = vector.extract_strided_slice %19 {offsets = [0, 128], sizes = [8, 128], strides = [1, 1]} : vector<8x256xf32> to vector<8x128xf32>
    %cst_17 = arith.constant -2.000000e+01 : f32
    %cst_18 = arith.constant 2.000000e+00 : f32
    %23 = vector.broadcast %cst_17 : f32 to vector<8x128xf32>
    %24 = arith.maximumf %23, %22 : vector<8x128xf32>
    %25 = vector.broadcast %cst_18 : f32 to vector<8x128xf32>
    %26 = arith.minimumf %25, %24 : vector<8x128xf32>
    %27 = math.exp %26 : vector<8x128xf32>
    %c0_19 = arith.constant 0 : index
    %c128_20 = arith.constant 128 : index
    %28 = vector.load %arg4[%c0_19, %c128_20] : memref<8x256xf32, #tpu.memory_space<vmem>>, vector<8x128xf32>
    tpu.vector_store %arg4[%c0_19, %c128_20], %27 {strides = array<i32>} : memref<8x256xf32, #tpu.memory_space<vmem>>, vector<8x128xf32>,
    return
  }
  func.func @transform_0(%arg0: i32) -> (i32, i32) {
    %c0_i32 = arith.constant 0 : i32
    %c0_i32_0 = arith.constant 0 : i32
    return %arg0, %c0_i32 : i32, i32
  }
  func.func @transform_1(%arg0: i32) -> (i32, i32) {
    %c0_i32 = arith.constant 0 : i32
    %c0_i32_0 = arith.constant 0 : i32
    %c0_i32_1 = arith.constant 0 : i32
    return %c0_i32, %c0_i32_0 : i32, i32
  }
  func.func @transform_2(%arg0: i32) -> (i32, i32) {
    %c0_i32 = arith.constant 0 : i32
    %c0_i32_0 = arith.constant 0 : i32
    %c0_i32_1 = arith.constant 0 : i32
    return %c0_i32, %c0_i32_0 : i32, i32
  }
  func.func @transform_3(%arg0: i32) -> (i32, i32) {
    %c0_i32 = arith.constant 0 : i32
    %c0_i32_0 = arith.constant 0 : i32
    return %arg0, %c0_i32 : i32, i32
  }
}

</mosaic_0001>

<llo_original>
// kernel: tpu_custom_call.1
$region0: #{tpu_custom_call.1}
  #allocation0 [shape = 'u32[]', space=smem, size = 0x4, offset = 0x4, fixed_abs, tag = 'smem constant byte address 0x4 - core index']
  #allocation1 [shape = 'u32[144,128]{1,0:T(1,128)}', space=vmem, size = 0x12000, scoped, tag = 'internal scratch']
  %s0 = inlined_call_operand.hbm [shape: f32[8,128], index: 0, kind: input, shape index: {}]
  %s1 = inlined_call_operand.hbm [shape: f32[128,512], index: 1, kind: input, shape index: {}]
  %s2 = inlined_call_operand.vmem [shape: f32[1,512], index: 2, kind: input, shape index: {}]
  %s3 = inlined_call_operand.hbm [shape: f32[8,256], index: 3, kind: output, shape index: {}]
  %s4 = sld [smem:[#allocation0]]
  $region30: #{tpu_custom_call.1} parent=0
    _
  %s6 = ssub.s32 1, %s4
  %s7 = scalar_select 0, %s6, %s4
  $region1: #{tpu_custom_call.1} parent=0
    #allocation2 [shape = 'u8[4096]{0}', space=vmem, size = 0x1000, scoped, tag = 'input window, operand 0, single buffered']
    #allocation3 [shape = 's32[1]{0}', space=sflag, size = 0x4, scoped, tag = 'scoped memory for tpu_custom_call.1']
    #allocation4 [shape = 's32[1]{0}', space=sflag, size = 0x4, scoped, tag = 'scoped memory for tpu_custom_call.1']
    #allocation5 [shape = 'u8[262144]{0}', space=vmem, size = 0x40000, scoped, tag = 'input window, operand 1, single buffered']
    #allocation6 [shape = 's32[1]{0}', space=sflag, size = 0x4, scoped, tag = 'scoped memory for tpu_custom_call.1']
    #allocation7 [shape = 'u8[8192]{0}', space=vmem, size = 0x2000, scoped, tag = 'output window, operand 0, single buffered']
    %8 = vsyncpa [#allocation3], 0
    %9 = vsyncpa [#allocation6], 0
    %10 = vsyncpa [#allocation4], 0
    // Predicated region
    $region2: #{tpu_custom_call.1} parent=1 // pred_check
      _
    $region3: #{tpu_custom_call.1} parent=1 // pred_check_branch
      %12 = sbr.rel (0) target = $region5
    $region4: #{tpu_custom_call.1} parent=1 // pred_region
      %s14 = ssub.s32 128, 128
      %15 = vsyncadd [#allocation3], %s14
      %s17 = sshll.u32 [#allocation2], 4
      %s18 = int_to_ptr.vmem [resolvable:$true] %s17
      %20 = dma.hbm_to_vmem [thread:$0]  %s0, 128, %s18, [#allocation3]
    $region5: #{tpu_custom_call.1} parent=1 // pred_fallthru
      _
    // Predicated region
    $region6: #{tpu_custom_call.1} parent=1 // pred_check
      _
    $region7: #{tpu_custom_call.1} parent=1 // pred_check_branch
      %22 = sbr.rel (0) target = $region9
    $region8: #{tpu_custom_call.1} parent=1 // pred_region
      %s24 = ssub.s32 8192, 8192
      %25 = vsyncadd [#allocation6], %s24
      %s26 = sshll.u32 [#allocation5], 4
      %s27 = int_to_ptr.vmem [resolvable:$true] %s26
      %32 = dma.hbm_to_vmem [thread:$0]  %s1, 8192, %s27, [#allocation6], 512, 512, 32
    $region9: #{tpu_custom_call.1} parent=1 // pred_fallthru
      _
    // Predicated region
    $region10: #{tpu_custom_call.1} parent=1 // pred_check
      _
    $region11: #{tpu_custom_call.1} parent=1 // pred_check_branch
      %34 = sbr.rel (0) target = $region13
    $region12: #{tpu_custom_call.1} parent=1 // pred_region
      _
    $region13: #{tpu_custom_call.1} parent=1 // pred_fallthru
      _
    // Predicated region
    $region14: #{tpu_custom_call.1} parent=1 // pred_check
      _
    $region15: #{tpu_custom_call.1} parent=1 // pred_check_branch
      %36 = sbr.rel (0) target = $region17
    $region16: #{tpu_custom_call.1} parent=1 // pred_region
      %37 = dma.done [#allocation3], 128
    $region17: #{tpu_custom_call.1} parent=1 // pred_fallthru
      _
    // Predicated region
    $region18: #{tpu_custom_call.1} parent=1 // pred_check
      _
    $region19: #{tpu_custom_call.1} parent=1 // pred_check_branch
      %39 = sbr.rel (0) target = $region21
    $region20: #{tpu_custom_call.1} parent=1 // pred_region
      %40 = dma.done [#allocation6], 8192
    $region21: #{tpu_custom_call.1} parent=1 // pred_fallthru
      _
    %v41 = vld [vmem:[#allocation2] sm:$0xff]
    %v42 = vld [vmem:[#allocation5] sm:$0xff]
    %v43 = vld [vmem:[#allocation5 + $0x20] sm:$0xff]
    %v44 = vld [vmem:[#allocation5 + $0x40] sm:$0xff]
    %v45 = vld [vmem:[#allocation5 + $0x60] sm:$0xff]
    %v46 = vld [vmem:[#allocation5 + $0x80] sm:$0xff]
    %v47 = vld [vmem:[#allocation5 + $0xa0] sm:$0xff]
    %v48 = vld [vmem:[#allocation5 + $0xc0] sm:$0xff]
    %v49 = vld [vmem:[#allocation5 + $0xe0] sm:$0xff]
    %v50 = vld [vmem:[#allocation5 + $0x100] sm:$0xff]
    %v51 = vld [vmem:[#allocation5 + $0x120] sm:$0xff]
    %v52 = vld [vmem:[#allocation5 + $0x140] sm:$0xff]
    %v53 = vld [vmem:[#allocation5 + $0x160] sm:$0xff]
    %v54 = vld [vmem:[#allocation5 + $0x180] sm:$0xff]
    %v55 = vld [vmem:[#allocation5 + $0x1a0] sm:$0xff]
    %v56 = vld [vmem:[#allocation5 + $0x1c0] sm:$0xff]
    %v57 = vld [vmem:[#allocation5 + $0x1e0] sm:$0xff]
    %v58 = vld [vmem:[%s2] sm:$0x1]
    %v60 = vlaneseq
    %v61 = vshrl.u32 %v60, 7
    %v62 = vsub.s32 0, %v61
    %v63 = vrot.slane %v58, %v62
    %65 = vmatprep.subr.mxu0 0.0
    %66 = vmatpush1.msra.mxu0 %v42
    %67 = vmatprep.subr.mxu0 0.0
    %68 = vmatpush1.msra.mxu0 %v43
    %69 = vmatprep.subr.mxu0 0.0
    %70 = vmatpush1.msra.mxu0 %v44
    %71 = vmatprep.subr.mxu0 0.0
    %72 = vmatpush1.msra.mxu0 %v45
    %73 = vmatprep.subr.mxu0 0.0
    %74 = vmatpush1.msra.mxu0 %v46
    %75 = vmatprep.subr.mxu0 0.0
    %76 = vmatpush1.msra.mxu0 %v47
    %77 = vmatprep.subr.mxu0 0.0
    %78 = vmatpush1.msra.mxu0 %v48
    %79 = vmatprep.subr.mxu0 0.0
    %80 = vmatpush1.msra.mxu0 %v49
    %81 = vmatprep.subr.mxu0 0.0
    %82 = vmatpush1.msra.mxu0 %v50
    %83 = vmatprep.subr.mxu0 0.0
    %84 = vmatpush1.msra.mxu0 %v51
    %85 = vmatprep.subr.mxu0 0.0
    %86 = vmatpush1.msra.mxu0 %v52
    %87 = vmatprep.subr.mxu0 0.0
    %88 = vmatpush1.msra.mxu0 %v53
    %89 = vmatprep.subr.mxu0 0.0
    %90 = vmatpush1.msra.mxu0 %v54
    %91 = vmatprep.subr.mxu0 0.0
    %92 = vmatpush1.msra.mxu0 %v55
    %93 = vmatprep.subr.mxu0 0.0
    %94 = vmatpush1.msra.mxu0 %v56
    %95 = vmatprep.subr.mxu0 0.0
    %96 = vmatpush1.msra.mxu0 %v57
    %97 = vmatprep.subr.mxu0 0.0
    %98 = vmatpush1.msra.mxu0 0.0
    %99 = vmatprep.subr.mxu0 0.0
    %100 = vmatpush1.msra.mxu0 0.0
    %101 = vmatprep.subr.mxu0 0.0
    %102 = vmatpush1.msra.mxu0 0.0
    %103 = vmatprep.subr.mxu0 0.0
    %104 = vmatpush1.msra.mxu0 0.0
    %105 = vmatprep.subr.mxu0 0.0
    %106 = vmatpush1.msra.mxu0 0.0
    %107 = vmatprep.subr.mxu0 0.0
    %108 = vmatpush1.msra.mxu0 0.0
    %109 = vmatprep.subr.mxu0 0.0
    %110 = vmatpush1.msra.mxu0 0.0
    %111 = vmatprep.subr.mxu0 0.0
    %112 = vmatpush1.msra.mxu0 0.0
    %113 = vmatprep.subr.mxu0 0.0
    %114 = vmatpush1.msra.mxu0 0.0
    %115 = vmatprep.subr.mxu0 0.0
    %116 = vmatpush1.msra.mxu0 0.0
    %117 = vmatprep.subr.mxu0 0.0
    %118 = vmatpush1.msra.mxu0 0.0
    %119 = vmatprep.subr.mxu0 0.0
    %120 = vmatpush1.msra.mxu0 0.0
    %121 = vmatprep.subr.mxu0 0.0
    %122 = vmatpush1.msra.mxu0 0.0
    %123 = vmatprep.subr.mxu0 0.0
    %124 = vmatpush1.msra.mxu0 0.0
    %125 = vmatprep.subr.mxu0 0.0
    %126 = vmatpush1.msra.mxu0 0.0
    %127 = vmatprep.subr.mxu0 0.0
    %128 = vmatpush1.msra.mxu0 0.0
    %129 = vmatprep.mubr.f32.mxu0 0.0
    %130 = vmatmul.mubr.f32.gmra.mrb[0].mxu0 %v41
    %v131 = vpop.f32.mrb[0].mxu0
    %v132 = vadd.f32 %v63, %v131
    %v133 = vpop.f32.mrb[0].mxu0
    %134 = vdwg.mxu0
    %v135 = vmax.f32 %v132, 0.0
    %v136 = vld [vmem:[#allocation5 + $0x8] sm:$0xff]
    %v137 = vld [vmem:[#allocation5 + $0x28] sm:$0xff]
    %v138 = vld [vmem:[#allocation5 + $0x48] sm:$0xff]
    %v139 = vld [vmem:[#allocation5 + $0x68] sm:$0xff]
    %v140 = vld [vmem:[#allocation5 + $0x88] sm:$0xff]
    %v141 = vld [vmem:[#allocation5 + $0xa8] sm:$0xff]
    %v142 = vld [vmem:[#allocation5 + $0xc8] sm:$0xff]
    %v143 = vld [vmem:[#allocation5 + $0xe8] sm:$0xff]
    %v144 = vld [vmem:[#allocation5 + $0x108] sm:$0xff]
    %v145 = vld [vmem:[#allocation5 + $0x128] sm:$0xff]
    %v146 = vld [vmem:[#allocation5 + $0x148] sm:$0xff]
    %v147 = vld [vmem:[#allocation5 + $0x168] sm:$0xff]
    %v148 = vld [vmem:[#allocation5 + $0x188] sm:$0xff]
    %v149 = vld [vmem:[#allocation5 + $0x1a8] sm:$0xff]
    %v150 = vld [vmem:[#allocation5 + $0x1c8] sm:$0xff]
    %v151 = vld [vmem:[#allocation5 + $0x1e8] sm:$0xff]
    %v152 = vld [vmem:[%s2 + $0x1] sm:$0x1]
    %v154 = vlaneseq
    %v155 = vshrl.u32 %v154, 7
    %v156 = vsub.s32 0, %v155
    %v157 = vrot.slane %v152, %v156
    %159 = vmatprep.subr.mxu0 0.0
    %160 = vmatpush1.msra.mxu0 %v136
    %161 = vmatprep.subr.mxu0 0.0
    %162 = vmatpush1.msra.mxu0 %v137
    %163 = vmatprep.subr.mxu0 0.0
    %164 = vmatpush1.msra.mxu0 %v138
    %165 = vmatprep.subr.mxu0 0.0
    %166 = vmatpush1.msra.mxu0 %v139
    %167 = vmatprep.subr.mxu0 0.0
    %168 = vmatpush1.msra.mxu0 %v140
    %169 = vmatprep.subr.mxu0 0.0
    %170 = vmatpush1.msra.mxu0 %v141
    %171 = vmatprep.subr.mxu0 0.0
    %172 = vmatpush1.msra.mxu0 %v142
    %173 = vmatprep.subr.mxu0 0.0
    %174 = vmatpush1.msra.mxu0 %v143
    %175 = vmatprep.subr.mxu0 0.0
    %176 = vmatpush1.msra.mxu0 %v144
    %177 = vmatprep.subr.mxu0 0.0
    %178 = vmatpush1.msra.mxu0 %v145
    %179 = vmatprep.subr.mxu0 0.0
    %180 = vmatpush1.msra.mxu0 %v146
    %181 = vmatprep.subr.mxu0 0.0
    %182 = vmatpush1.msra.mxu0 %v147
    %183 = vmatprep.subr.mxu0 0.0
    %184 = vmatpush1.msra.mxu0 %v148
    %185 = vmatprep.subr.mxu0 0.0
    %186 = vmatpush1.msra.mxu0 %v149
    %187 = vmatprep.subr.mxu0 0.0
    %188 = vmatpush1.msra.mxu0 %v150
    %189 = vmatprep.subr.mxu0 0.0
    %190 = vmatpush1.msra.mxu0 %v151
    %191 = vmatprep.subr.mxu0 0.0
    %192 = vmatpush1.msra.mxu0 0.0
    %193 = vmatprep.subr.mxu0 0.0
    %194 = vmatpush1.msra.mxu0 0.0
    %195 = vmatprep.subr.mxu0 0.0
    %196 = vmatpush1.msra.mxu0 0.0
    %197 = vmatprep.subr.mxu0 0.0
    %198 = vmatpush1.msra.mxu0 0.0
    %199 = vmatprep.subr.mxu0 0.0
    %200 = vmatpush1.msra.mxu0 0.0
    %201 = vmatprep.subr.mxu0 0.0
    %202 = vmatpush1.msra.mxu0 0.0
    %203 = vmatprep.subr.mxu0 0.0
    %204 = vmatpush1.msra.mxu0 0.0
    %205 = vmatprep.subr.mxu0 0.0
    %206 = vmatpush1.msra.mxu0 0.0
    %207 = vmatprep.subr.mxu0 0.0
    %208 = vmatpush1.msra.mxu0 0.0
    %209 = vmatprep.subr.mxu0 0.0
    %210 = vmatpush1.msra.mxu0 0.0
    %211 = vmatprep.subr.mxu0 0.0
    %212 = vmatpush1.msra.mxu0 0.0
    %213 = vmatprep.subr.mxu0 0.0
    %214 = vmatpush1.msra.mxu0 0.0
    %215 = vmatprep.subr.mxu0 0.0
    %216 = vmatpush1.msra.mxu0 0.0
    %217 = vmatprep.subr.mxu0 0.0
    %218 = vmatpush1.msra.mxu0 0.0
    %219 = vmatprep.subr.mxu0 0.0
    %220 = vmatpush1.msra.mxu0 0.0
    %221 = vmatprep.subr.mxu0 0.0
    %222 = vmatpush1.msra.mxu0 0.0
    %223 = vmatprep.mubr.f32.mxu0 0.0
    %224 = vmatmul.mubr.f32.gmra.mrb[0].mxu0 %v135
    %v225 = vpop.f32.mrb[0].mxu0
    %v226 = vadd.f32 %v157, %v225
    %v227 = vpop.f32.mrb[0].mxu0
    %228 = vdwg.mxu0
    %v229 = vmax.f32 %v226, 0.0
    %v230 = vld [vmem:[#allocation5 + $0x10] sm:$0xff]
    %v231 = vld [vmem:[#allocation5 + $0x18] sm:$0xff]
    %v232 = vld [vmem:[#allocation5 + $0x30] sm:$0xff]
    %v233 = vld [vmem:[#allocation5 + $0x38] sm:$0xff]
    %v234 = vld [vmem:[#allocation5 + $0x50] sm:$0xff]
    %v235 = vld [vmem:[#allocation5 + $0x58] sm:$0xff]
    %v236 = vld [vmem:[#allocation5 + $0x70] sm:$0xff]
    %v237 = vld [vmem:[#allocation5 + $0x78] sm:$0xff]
    %v238 = vld [vmem:[#allocation5 + $0x90] sm:$0xff]
    %v239 = vld [vmem:[#allocation5 + $0x98] sm:$0xff]
    %v240 = vld [vmem:[#allocation5 + $0xb0] sm:$0xff]
    %v241 = vld [vmem:[#allocation5 + $0xb8] sm:$0xff]
    %v242 = vld [vmem:[#allocation5 + $0xd0] sm:$0xff]
    %v243 = vld [vmem:[#allocation5 + $0xd8] sm:$0xff]
    %v244 = vld [vmem:[#allocation5 + $0xf0] sm:$0xff]
    %v245 = vld [vmem:[#allocation5 + $0xf8] sm:$0xff]
    %v246 = vld [vmem:[#allocation5 + $0x110] sm:$0xff]
    %v247 = vld [vmem:[#allocation5 + $0x118] sm:$0xff]
    %v248 = vld [vmem:[#allocation5 + $0x130] sm:$0xff]
    %v249 = vld [vmem:[#allocation5 + $0x138] sm:$0xff]
    %v250 = vld [vmem:[#allocation5 + $0x150] sm:$0xff]
    %v251 = vld [vmem:[#allocation5 + $0x158] sm:$0xff]
    %v252 = vld [vmem:[#allocation5 + $0x170] sm:$0xff]
    %v253 = vld [vmem:[#allocation5 + $0x178] sm:$0xff]
    %v254 = vld [vmem:[#allocation5 + $0x190] sm:$0xff]
    %v255 = vld [vmem:[#allocation5 + $0x198] sm:$0xff]
    %v256 = vld [vmem:[#allocation5 + $0x1b0] sm:$0xff]
    %v257 = vld [vmem:[#allocation5 + $0x1b8] sm:$0xff]
    %v258 = vld [vmem:[#allocation5 + $0x1d0] sm:$0xff]
    %v259 = vld [vmem:[#allocation5 + $0x1d8] sm:$0xff]
    %v260 = vld [vmem:[#allocation5 + $0x1f0] sm:$0xff]
    %v261 = vld [vmem:[#allocation5 + $0x1f8] sm:$0xff]
    %v262 = vld [vmem:[%s2 + $0x2] sm:$0x3]
    %v264 = vlaneseq
    %v265 = vshrl.u32 %v264, 7
    %v266 = vsub.s32 0, %v265
    %v267 = vrot.slane %v262, %v266
    %v268 = vlaneseq
    %v269 = vshrl.u32 %v268, 7
    %v270 = vsub.s32 1, %v269
    %v271 = vrot.slane %v262, %v270
    %274 = vmatprep.subr.mxu0 %v231
    %275 = vmatpush1.msra.mxu0 %v230
    %276 = vmatprep.subr.mxu0 %v233
    %277 = vmatpush1.msra.mxu0 %v232
    %278 = vmatprep.subr.mxu0 %v235
    %279 = vmatpush1.msra.mxu0 %v234
    %280 = vmatprep.subr.mxu0 %v237
    %281 = vmatpush1.msra.mxu0 %v236
    %282 = vmatprep.subr.mxu0 %v239
    %283 = vmatpush1.msra.mxu0 %v238
    %284 = vmatprep.subr.mxu0 %v241
    %285 = vmatpush1.msra.mxu0 %v240
    %286 = vmatprep.subr.mxu0 %v243
    %287 = vmatpush1.msra.mxu0 %v242
    %288 = vmatprep.subr.mxu0 %v245
    %289 = vmatpush1.msra.mxu0 %v244
    %290 = vmatprep.subr.mxu0 %v247
    %291 = vmatpush1.msra.mxu0 %v246
    %292 = vmatprep.subr.mxu0 %v249
    %293 = vmatpush1.msra.mxu0 %v248
    %294 = vmatprep.subr.mxu0 %v251
    %295 = vmatpush1.msra.mxu0 %v250
    %296 = vmatprep.subr.mxu0 %v253
    %297 = vmatpush1.msra.mxu0 %v252
    %298 = vmatprep.subr.mxu0 %v255
    %299 = vmatpush1.msra.mxu0 %v254
    %300 = vmatprep.subr.mxu0 %v257
    %301 = vmatpush1.msra.mxu0 %v256
    %302 = vmatprep.subr.mxu0 %v259
    %303 = vmatpush1.msra.mxu0 %v258
    %304 = vmatprep.subr.mxu0 %v261
    %305 = vmatpush1.msra.mxu0 %v260
    %306 = vmatprep.subr.mxu0 0.0
    %307 = vmatpush1.msra.mxu0 0.0
    %308 = vmatprep.subr.mxu0 0.0
    %309 = vmatpush1.msra.mxu0 0.0
    %310 = vmatprep.subr.mxu0 0.0
    %311 = vmatpush1.msra.mxu0 0.0
    %312 = vmatprep.subr.mxu0 0.0
    %313 = vmatpush1.msra.mxu0 0.0
    %314 = vmatprep.subr.mxu0 0.0
    %315 = vmatpush1.msra.mxu0 0.0
    %316 = vmatprep.subr.mxu0 0.0
    %317 = vmatpush1.msra.mxu0 0.0
    %318 = vmatprep.subr.mxu0 0.0
    %319 = vmatpush1.msra.mxu0 0.0
    %320 = vmatprep.subr.mxu0 0.0
    %321 = vmatpush1.msra.mxu0 0.0
    %322 = vmatprep.subr.mxu0 0.0
    %323 = vmatpush1.msra.mxu0 0.0
    %324 = vmatprep.subr.mxu0 0.0
    %325 = vmatpush1.msra.mxu0 0.0
    %326 = vmatprep.subr.mxu0 0.0
    %327 = vmatpush1.msra.mxu0 0.0
    %328 = vmatprep.subr.mxu0 0.0
    %329 = vmatpush1.msra.mxu0 0.0
    %330 = vmatprep.subr.mxu0 0.0
    %331 = vmatpush1.msra.mxu0 0.0
    %332 = vmatprep.subr.mxu0 0.0
    %333 = vmatpush1.msra.mxu0 0.0
    %334 = vmatprep.subr.mxu0 0.0
    %335 = vmatpush1.msra.mxu0 0.0
    %336 = vmatprep.subr.mxu0 0.0
    %337 = vmatpush1.msra.mxu0 0.0
    %338 = vmatprep.mubr.f32.mxu0 0.0
    %339 = vmatmul.mubr.f32.gmra.mrb[0].mxu0 %v229
    %v340 = vpop.f32.mrb[0].mxu0
    %v341 = vadd.f32 %v267, %v340
    %v342 = vpop.f32.mrb[0].mxu0
    %v343 = vadd.f32 %v271, %v342
    %344 = vdwg.mxu0
    %345 = vst [vmem:[#allocation7] sm:$0xff] %v341
    %v346 = vmax.f32 %v343, -20.0
    %v347 = vmin.f32 %v346, 2.0
    %v348 = vmul.f32 %v347, 1.442695
    %v349 = vpow.pop %v348
    %350 = vst [vmem:[#allocation7 + $0x8] sm:$0xff] %v349
    // Predicated region
    $region22: #{tpu_custom_call.1} parent=1 // pred_check
      _
    $region23: #{tpu_custom_call.1} parent=1 // pred_check_branch
      %352 = sbr.rel (0) target = $region25
    $region24: #{tpu_custom_call.1} parent=1 // pred_region
      %s354 = ssub.s32 256, 256
      %355 = vsyncadd [#allocation4], %s354
      %s357 = sshll.u32 [#allocation7], 4
      %s358 = int_to_ptr.vmem [resolvable:$true] %s357
      %360 = dma.vmem_to_hbm [thread:$0]  %s358, 256, %s3, [#allocation4]
    $region25: #{tpu_custom_call.1} parent=1 // pred_fallthru
      _
    // Predicated region
    $region26: #{tpu_custom_call.1} parent=1 // pred_check
      _
    $region27: #{tpu_custom_call.1} parent=1 // pred_check_branch
      %362 = sbr.rel (0) target = $region29
    $region28: #{tpu_custom_call.1} parent=1 // pred_region
      %363 = dma.done [#allocation4], 256
    $region29: #{tpu_custom_call.1} parent=1 // pred_fallthru
      _
    %364 = vsyncpa [#allocation3], 1
    %365 = vsyncpa [#allocation6], 1
    %366 = vsyncpa [#allocation4], 1

</llo_original>
